<compile_context>
chip_gen: v5e
topology: v5e:2x2
jax: 0.10.0
libtpu: 0.0.40
codegen_flags: <defaults>
</compile_context>

<pallas_src>
import functools

import jax
import jax.numpy as jnp
from jax import lax
from jax.experimental import pallas as pl
from jax.experimental.pallas import tpu as pltpu


def _global_avg_pool_kernel(x_ref, o_ref, acc_ref, *, inv_s, s_total, ts, mask_s):
    # x_ref   : (TR, TS)  rows = flattened (batch, channel), cols = chunk of H*W
    # o_ref   : (TR, 1)   per-row means, written on the last reduction step
    # acc_ref : (TR, 1)   f32 partial-sum accumulator, resident across the S axis
    k = pl.program_id(1)

    @pl.when(k == 0)
    def _init():
        acc_ref[...] = jnp.zeros_like(acc_ref)

    x = x_ref[...]
    if mask_s:
        # Zero the padded tail columns of the final (partial) S tile.
        col = k * ts + lax.broadcasted_iota(jnp.int32, x.shape, 1)
        x = jnp.where(col < s_total, x, jnp.zeros_like(x))

    # f32 accumulation promoted per-vreg (no full-width f32 copy of the tile).
    acc_ref[...] += jnp.sum(x, axis=-1, keepdims=True, dtype=jnp.float32)

    @pl.when(k == pl.num_programs(1) - 1)
    def _finalize():
        o_ref[...] = (acc_ref[...] * inv_s).astype(o_ref.dtype)


def _vmem_plan():
    """Return (input-block budget, vmem_limit cap) gated on this chip's VMEM."""
    try:
        info = pltpu.get_tpu_info()
        vmem_cap = int(getattr(info, "vmem_capacity_bytes", 0)) or (64 << 20)
    except Exception:
        vmem_cap = 64 << 20  # conservative: v7x has 64 MiB per TensorCore
    if vmem_cap > (64 << 20):
        # v5e / v6e (128 MiB VMEM): larger tiles are safe.
        return 12 << 20, 48 << 20
    # v7x (or unknown): keep blocks <= ~8 MiB, scoped VMEM <= 32 MiB.
    return 8 << 20, 32 << 20


def _plan_tiles(R, S, itemsize, block_budget):
    """Pick (TR, TS): sublane/lane aligned, budget-bound, pipeline-friendly."""
    sublane = max(8, 32 // itemsize)           # 8 (f32), 16 (bf16), 32 (int8/fp8)
    r_up = pl.cdiv(R, sublane) * sublane

    if S * sublane * itemsize <= block_budget:
        # Whole reduction axis fits in one block.
        TS = S
        rows_fit = (block_budget // (S * itemsize)) // sublane * sublane
        TR = min(max(sublane, rows_fit), r_up)
        # Keep ~8 row tiles when R allows (megacore + DMA/compute overlap).
        cap = max(sublane, pl.cdiv(pl.cdiv(r_up, 8), sublane) * sublane)
        TR = max(sublane, min(TR, cap))
        if TR >= 256:                          # vreg-aligned row tiles when large
            TR = (TR // 128) * 128
        # If the grid still collapses to a single step, split S instead so the
        # pipeline has something to prefetch.
        if TR >= r_up and TR * S * itemsize > (2 << 20) and S >= 512:
            lanes = max(128, ((2 << 20) // (TR * itemsize)) // 128 * 128)
            TS = min(lanes, pl.cdiv(S, 128) * 128)
    else:
        # Even one sublane of rows x full S overflows the budget: split S.
        TR = min(sublane, r_up)
        lanes = max(128, (block_budget // (TR * itemsize)) // 128 * 128)
        TS = min(lanes, pl.cdiv(S, 128) * 128)
    return TR, TS


def global_avg_pool_2d(x, *, force_pallas=False):
    """GlobalAvgPool2d forward.  x: (B, C, H, W) -> (B, C)."""
    B, C, H, W = x.shape
    R, S = B * C, H * W
    itemsize = jnp.dtype(x.dtype).itemsize

    # Tiny inputs: a single-step grid cannot pipeline and the fixed kernel
    # overhead dominates; XLA fusion wins on every generation.
    if not force_pallas and R * S * itemsize < (256 << 10):
        return jnp.mean(x.astype(jnp.float32), axis=(2, 3)).astype(x.dtype)

    block_budget, vmem_cap = _vmem_plan()
    TR, TS = _plan_tiles(R, S, itemsize, block_budget)
    num_row_tiles = pl.cdiv(R, TR)
    num_s_tiles = pl.cdiv(S, TS)
    mask_s = (num_s_tiles * TS) != S
    inv_s = 1.0 / float(S)                    # 1/(H*W), tiling-independent

    x2 = x.reshape(R, S)

    kernel = functools.partial(
        _global_avg_pool_kernel, inv_s=inv_s, s_total=S, ts=TS, mask_s=mask_s)

    # Scoped-VMEM budget from the actual buffer plan: up to 3 in-flight input
    # blocks, double-buffered (tiny) output blocks, f32 accumulator, slack.
    in_block = TR * TS * itemsize
    out_block = TR * itemsize
    acc_bytes = TR * 4
    vmem_limit = int(min(
        vmem_cap,
        max(16 << 20, 3 * in_block + 2 * out_block + acc_bytes + (2 << 20))))

    cost = pl.CostEstimate(
        flops=R * S + R,
        transcendentals=0,
        bytes_accessed=R * S * itemsize + R * itemsize,
    )

    out = pl.pallas_call(
        kernel,
        out_shape=jax.ShapeDtypeStruct((num_row_tiles * TR, 1), x.dtype),
        grid=(num_row_tiles, num_s_tiles),
        in_specs=[pl.BlockSpec((TR, TS), lambda i, k: (i, k))],
        out_specs=pl.BlockSpec((TR, 1), lambda i, k: (i, 0)),
        scratch_shapes=[pltpu.VMEM((TR, 1), jnp.float32)],
        compiler_params=pltpu.CompilerParams(
            dimension_semantics=("parallel", "arbitrary"),
            vmem_limit_bytes=vmem_limit,
        ),
        cost_estimate=cost,
    )(x2)

    # Drop the row padding of the last row tile and restore (B, C).
    return out.reshape(num_row_tiles * TR)[:R].reshape(B, C)


if __name__ == "__main__":
    key = jax.random.PRNGKey(0)

    # 1) Harness shape, forced through the Pallas kernel (grid (1, 1)).
    B, C, H, W = 2, 4, 16, 16
    x = jax.random.normal(key, (B, C, H, W), dtype=jnp.float32)
    y = jax.block_until_ready(global_avg_pool_2d(x, force_pallas=True))
    ref = jnp.mean(x, axis=(2, 3))
    assert y.shape == (B, C), y.shape
    assert jnp.allclose(y, ref, atol=1e-5, rtol=1e-5)

    # 2) Same shape through the small-input fast path (XLA fusion).
    y_fast = jax.block_until_ready(global_avg_pool_2d(x))
    assert jnp.allclose(y_fast, ref, atol=1e-5, rtol=1e-5)

    # 3) Multi row-tile path (parallel row axis, whole-S blocks, row padding).
    x3 = jax.random.normal(jax.random.PRNGKey(1), (4, 64, 24, 24), dtype=jnp.float32)
    y3 = jax.block_until_ready(global_avg_pool_2d(x3))
    ref3 = jnp.mean(x3, axis=(2, 3))
    assert y3.shape == (4, 64), y3.shape
    assert jnp.allclose(y3, ref3, atol=1e-5, rtol=1e-5)

    # 4) Fat-S path: split reduction axis + masked tail + f32 accumulator.
    x4 = jax.random.normal(jax.random.PRNGKey(2), (1, 6, 260, 260), dtype=jnp.float32)
    y4 = jax.block_until_ready(global_avg_pool_2d(x4))
    ref4 = jnp.mean(x4, axis=(2, 3))
    assert y4.shape == (1, 6), y4.shape
    assert jnp.allclose(y4, ref4, atol=1e-4, rtol=1e-4)

    print("KERNEL_OK")
</pallas_src>

<mosaic_0001>
module attributes {stable_mosaic.version = 11 : i64} {
  func.func @_global_avg_pool_kernel(%arg0: i32, %arg1: i32, %arg2: memref<8x256xf32, #tpu.memory_space<vmem>>, %arg3: memref<8x1xf32, #tpu.memory_space<vmem>>, %arg4: memref<8x1xf32, #tpu.memory_space<vmem>>) attributes {dimension_semantics = [#tpu.dimension_semantics<parallel>, #tpu.dimension_semantics<arbitrary>], iteration_bounds = array<i64: 1, 1>, scalar_prefetch = 0 : i64, scratch_operands = 1 : i64, tpu.core_type = #tpu.core_type<tc>, window_params = [{transform_indices = @transform_0, window_bounds = array<i64: 8, 256>}, {transform_indices = @transform_1, window_bounds = array<i64: 8, 1>}]} {
    %c0_i32 = arith.constant 0 : i32
    %0 = arith.cmpi eq, %arg1, %c0_i32 : i32
    %1 = arith.extui %0 : i1 to i32
    %c0_i32_0 = arith.constant 0 : i32
    %2 = arith.cmpi ne, %1, %c0_i32_0 : i32
    scf.if %2 {
      %cst_8 = arith.constant 0.000000e+00 : f32
      %12 = vector.broadcast %cst_8 : f32 to vector<8x1xf32>
      %c0_9 = arith.constant 0 : index
      %c0_10 = arith.constant 0 : index
      %13 = vector.load %arg4[%c0_9, %c0_10] : memref<8x1xf32, #tpu.memory_space<vmem>>, vector<8x1xf32>
      tpu.vector_store %arg4[%c0_9, %c0_10], %12 {strides = array<i32>} : memref<8x1xf32, #tpu.memory_space<vmem>>, vector<8x1xf32>,
    } else {
    }
    %c0 = arith.constant 0 : index
    %c0_1 = arith.constant 0 : index
    %3 = vector.load %arg2[%c0, %c0_1] : memref<8x256xf32, #tpu.memory_space<vmem>>, vector<8x256xf32>
    %c0_2 = arith.constant 0 : index
    %c0_3 = arith.constant 0 : index
    %4 = vector.load %arg4[%c0_2, %c0_3] : memref<8x1xf32, #tpu.memory_space<vmem>>, vector<8x1xf32>
    %cst = arith.constant dense<0.000000e+00> : vector<8xf32>
    %5 = vector.multi_reduction <add>, %3, %cst [1] : vector<8x256xf32> to vector<8xf32>
    %6 = vector.shape_cast %5 : vector<8xf32> to vector<8x1xf32>
    %7 = arith.addf %4, %6 : vector<8x1xf32>
    %c0_4 = arith.constant 0 : index
    %c0_5 = arith.constant 0 : index
    %8 = vector.load %arg4[%c0_4, %c0_5] : memref<8x1xf32, #tpu.memory_space<vmem>>, vector<8x1xf32>
    tpu.vector_store %arg4[%c0_4, %c0_5], %7 {strides = array<i32>} : memref<8x1xf32, #tpu.memory_space<vmem>>, vector<8x1xf32>,
    %c0_i32_6 = arith.constant 0 : i32
    %9 = arith.cmpi eq, %arg1, %c0_i32_6 : i32
    %10 = arith.extui %9 : i1 to i32
    %c0_i32_7 = arith.constant 0 : i32
    %11 = arith.cmpi ne, %10, %c0_i32_7 : i32
    scf.if %11 {
      %c0_8 = arith.constant 0 : index
      %c0_9 = arith.constant 0 : index
      %12 = vector.load %arg4[%c0_8, %c0_9] : memref<8x1xf32, #tpu.memory_space<vmem>>, vector<8x1xf32>
      %cst_10 = arith.constant 3.906250e-03 : f32
      %13 = vector.broadcast %cst_10 : f32 to vector<8x1xf32>
      %14 = arith.mulf %12, %13 : vector<8x1xf32>
      %c0_11 = arith.constant 0 : index
      %c0_12 = arith.constant 0 : index
      %15 = vector.load %arg3[%c0_11, %c0_12] : memref<8x1xf32, #tpu.memory_space<vmem>>, vector<8x1xf32>
      tpu.vector_store %arg3[%c0_11, %c0_12], %14 {strides = array<i32>} : memref<8x1xf32, #tpu.memory_space<vmem>>, vector<8x1xf32>,
    } else {
    }
    return
  }
  func.func @transform_0(%arg0: i32, %arg1: i32) -> (i32, i32) {
    %c0_i32 = arith.constant 0 : i32
    return %arg0, %arg1 : i32, i32
  }
  func.func @transform_1(%arg0: i32, %arg1: i32) -> (i32, i32) {
    %c0_i32 = arith.constant 0 : i32
    %c0_i32_0 = arith.constant 0 : i32
    return %arg0, %c0_i32 : i32, i32
  }
}

</mosaic_0001>

<llo_original>
// kernel: tpu_custom_call.1
$region0: #{tpu_custom_call.1}
  #allocation0 [shape = 'u32[]', space=smem, size = 0x4, offset = 0x4, fixed_abs, tag = 'smem constant byte address 0x4 - core index']
  #allocation1 [shape = 'u32[72,128]{1,0:T(1,128)}', space=vmem, size = 0x9000, scoped, tag = 'internal scratch']
  #allocation2 [shape = 'f32[8,1]{1,0:T(8,128)}', space=vmem, size = 0x1000, scoped, tag = 'scratch operand']
  %s0 = inlined_call_operand.hbm [shape: f32[8,256], index: 0, kind: input, shape index: {}]
  %s1 = inlined_call_operand.vmem [shape: f32[8,1], index: 1, kind: output, shape index: {}]
  %s2 = sld [smem:[#allocation0]]
  $region26: #{tpu_custom_call.1} parent=0
    _
  %s4 = ssub.s32 1, %s2
  %s5 = scalar_select 0, %s4, %s2
  $region1: #{tpu_custom_call.1} parent=0
    #allocation3 [shape = 'u8[8192]{0}', space=vmem, size = 0x2000, scoped, tag = 'input window, operand 0, single buffered']
    #allocation4 [shape = 's32[1]{0}', space=sflag, size = 0x4, scoped, tag = 'scoped memory for tpu_custom_call.1']
    %6 = vsyncpa [#allocation4], 0
    // Predicated region
    $region2: #{tpu_custom_call.1} parent=1 // pred_check
      _
    $region3: #{tpu_custom_call.1} parent=1 // pred_check_branch
      %8 = sbr.rel (0) target = $region5
    $region4: #{tpu_custom_call.1} parent=1 // pred_region
      %10 = vsyncadd [#allocation4], 0
      %s12 = sshll.u32 %s0, 4
      %s13 = int_to_ptr.hbm [resolvable:$true] %s12
      %s14 = sshll.u32 [#allocation3], 4
      %s15 = int_to_ptr.vmem [resolvable:$true] %s14
      %17 = dma.hbm_to_vmem [thread:$0]  %s13, 256, %s15, [#allocation4]
    $region5: #{tpu_custom_call.1} parent=1 // pred_fallthru
      _
    // Predicated region
    $region6: #{tpu_custom_call.1} parent=1 // pred_check
      _
    $region7: #{tpu_custom_call.1} parent=1 // pred_check_branch
      %19 = sbr.rel (0) target = $region9
    $region8: #{tpu_custom_call.1} parent=1 // pred_region
      %21 = dma.done [#allocation4], 256
    $region9: #{tpu_custom_call.1} parent=1 // pred_fallthru
      _
    %p22 = scmp.eq.s32.totalorder 0, 0
    // Predicated region
    $region10: #{tpu_custom_call.1} parent=1 // pred_check
      %p23 = pneg %p22
    $region11: #{tpu_custom_call.1} parent=1 // pred_check_branch
      %25 = sbr.rel (%p23) target = $region13
    $region12: #{tpu_custom_call.1} parent=1 // pred_region
      %vm26 = vcmask 7168
      %27 = vst.msk [vmem:[#allocation2] sm:$0xff] %vm26, 0.0
    $region13: #{tpu_custom_call.1} parent=1 // pred_fallthru
      _
    %v28 = vld [vmem:[#allocation3] sm:$0xff]
    %v29 = vld [vmem:[#allocation3 + $0x8] sm:$0xff]
    %v30 = vld [vmem:[#allocation2] sm:$0xff]
    %v31 = vadd.f32 %v28, %v29
    %32 = vadd.xlane.f32.xlu0 %v31
    %v33 = vpop.xlane.xlu0 %32
    %v34 = vadd.f32 %v30, %v33
    %vm35 = vcmask 7168
    %36 = vst.msk [vmem:[#allocation2] sm:$0xff] %vm35, %v34
    // Predicated region
    $region14: #{tpu_custom_call.1} parent=1 // pred_check
      %p37 = pneg %p22
    $region15: #{tpu_custom_call.1} parent=1 // pred_check_branch
      %39 = sbr.rel (%p37) target = $region17
    $region16: #{tpu_custom_call.1} parent=1 // pred_region
      %v40 = vld [vmem:[#allocation2] sm:$0xff]
      %v41 = vmul.f32 %v40, 0.00390625
      %42 = vst.msk [vmem:[%s1] sm:$0xff] %vm35, %v41
    $region17: #{tpu_custom_call.1} parent=1 // pred_fallthru
      _
    // Predicated region
    $region18: #{tpu_custom_call.1} parent=1 // pred_check
      _
    $region19: #{tpu_custom_call.1} parent=1 // pred_check_branch
      %44 = sbr.rel (0) target = $region21
    $region20: #{tpu_custom_call.1} parent=1 // pred_region
      _
    $region21: #{tpu_custom_call.1} parent=1 // pred_fallthru
      _
    // Predicated region
    $region22: #{tpu_custom_call.1} parent=1 // pred_check
      _
    $region23: #{tpu_custom_call.1} parent=1 // pred_check_branch
      %46 = sbr.rel (0) target = $region25
    $region24: #{tpu_custom_call.1} parent=1 // pred_region
      _
    $region25: #{tpu_custom_call.1} parent=1 // pred_fallthru
      _
    %47 = vsyncpa [#allocation4], 1

</llo_original>
